<compile_context>
chip_gen: v5e
topology: v5e:2x2
jax: 0.10.0
libtpu: 0.0.40
codegen_flags: <defaults>
</compile_context>

<pallas_src>
import functools
import math

import jax
import jax.numpy as jnp
from jax.experimental import pallas as pl
from jax.experimental.pallas import tpu as pltpu

LOG_SIG_MAX = 2.0
LOG_SIG_MIN = -20.0


def _round_up(x, m):
    return ((x + m - 1) // m) * m


def _pick_batch_tile(batch):
    """Batch tile: multiple of 16 (bf16 sublane pair).  For larger batches,
    pick a tile so the grid has >= 2 steps (v7x: both TensorCores used) with
    modest batch padding; cap at 1024 rows for very large batches."""
    if batch <= 128:
        return _round_up(batch, 16)
    if batch <= 2048:
        return min(256, _round_up((batch + 1) // 2, 16))
    return 1024


def _gaussian_policy_kernel(s_ref, c_ref, w1s_ref, w1c_ref, b1_ref,
                            w2_ref, b2_ref, wh_ref, bh_ref, out_ref,
                            *, num_actions):
    # Layer 1: split matmul (state | context) @ (w1_state | w1_context), fp32
    # operands (contraction dims are the raw state/context widths), + b1, ReLU.
    h1 = (jnp.dot(s_ref[...], w1s_ref[...], preferred_element_type=jnp.float32)
          + jnp.dot(c_ref[...], w1c_ref[...], preferred_element_type=jnp.float32)
          + b1_ref[...])
    h1 = jnp.maximum(h1, 0.0).astype(jnp.bfloat16)
    # Layer 2: (TB, H_pad) bf16 @ (H_pad, H_pad) bf16 -> fp32, + b2, ReLU.
    h2 = jnp.dot(h1, w2_ref[...],
                 preferred_element_type=jnp.float32) + b2_ref[...]
    h2 = jnp.maximum(h2, 0.0).astype(jnp.bfloat16)
    # Packed heads: lanes [0, A) = mean, lanes [A, 2A) = log_std.
    heads = jnp.dot(h2, wh_ref[...],
                    preferred_element_type=jnp.float32) + bh_ref[...]
    lane = jax.lax.broadcasted_iota(jnp.int32, heads.shape, 1)
    clamped = jnp.clip(heads, LOG_SIG_MIN, LOG_SIG_MAX)
    # Clamp only the log_std lanes; clamping padding lanes (>= 2A) is harmless
    # since they are sliced off outside the kernel.
    out_ref[...] = jnp.where(lane >= num_actions, clamped, heads)


def init_gaussian_policy_params(key, num_inputs, num_actions, hidden_dim):
    """Logical (unpadded) fp32 params. Xavier-uniform weights, zero biases,
    mirrors weights_init_. Weights stored (in, out) so kernel does x @ W."""
    def xavier(k, fan_in, fan_out):
        limit = math.sqrt(6.0 / (fan_in + fan_out))
        return jax.random.uniform(k, (fan_in, fan_out), jnp.float32,
                                  minval=-limit, maxval=limit)

    k1, k2, k3, k4 = jax.random.split(key, 4)
    return {
        "w1": xavier(k1, num_inputs, hidden_dim),
        "b1": jnp.zeros((1, hidden_dim), jnp.float32),
        "w2": xavier(k2, hidden_dim, hidden_dim),
        "b2": jnp.zeros((1, hidden_dim), jnp.float32),
        "wm": xavier(k3, hidden_dim, num_actions),
        "bm": jnp.zeros((1, num_actions), jnp.float32),
        "ws": xavier(k4, hidden_dim, num_actions),
        "bs": jnp.zeros((1, num_actions), jnp.float32),
    }


def pack_params(params, state_dim):
    """Kernel-side parameter layout:
      * linear1 weight split into state/context row blocks, kept fp32.
      * hidden axis zero-padded to a multiple of 128 (lane-dense).
      * mean / log_std heads lane-packed into one (H_pad, 128) bf16 weight:
        lanes [0, A) = mean, lanes [A, 2A) = log_std; packed bias likewise.
      * big weights (w2, packed heads) cast to bf16 (fp32 accumulation in
        kernel); biases stay fp32."""
    w1, w2 = params["w1"], params["w2"]
    hidden = w2.shape[1]
    num_actions = params["wm"].shape[1]
    h_pad = _round_up(hidden, 128)
    head_pad = _round_up(2 * num_actions, 128)

    def padw(w, rows, cols, dtype):
        return jnp.pad(w, ((0, rows - w.shape[0]),
                           (0, cols - w.shape[1]))).astype(dtype)

    def padb(b, cols):
        return jnp.pad(b, ((0, 0), (0, cols - b.shape[1])))  # fp32

    wh = jnp.concatenate([params["wm"], params["ws"]], axis=1)  # (H, 2A)
    bh = jnp.concatenate([params["bm"], params["bs"]], axis=1)  # (1, 2A)
    return {
        "w1s": padw(w1[:state_dim], state_dim, h_pad, jnp.float32),
        "w1c": padw(w1[state_dim:], w1.shape[0] - state_dim, h_pad, jnp.float32),
        "b1": padb(params["b1"], h_pad),
        "w2": padw(w2, h_pad, h_pad, jnp.bfloat16),
        "b2": padb(params["b2"], h_pad),
        "wh": padw(wh, h_pad, head_pad, jnp.bfloat16),
        "bh": padb(bh, head_pad),
    }


def gaussian_policy_forward(state, context, packed_params, num_actions):
    """Fused forward. state: (B, S) f32, context: (B, C) f32.
    Returns (mean, log_std), each (B, num_actions) f32."""
    p = packed_params
    state = state.astype(jnp.float32)
    context = context.astype(jnp.float32)
    B, S = state.shape
    _, C = context.shape
    h_pad = p["w2"].shape[0]
    head_pad = p["wh"].shape[1]

    TB = _pick_batch_tile(B)
    B_pad = _round_up(B, TB)
    if B_pad != B:  # only the batch axis is padded; feature axes stay raw
        state = jnp.pad(state, ((0, B_pad - B), (0, 0)))
        context = jnp.pad(context, ((0, B_pad - B), (0, 0)))

    rep = lambda shape: pl.BlockSpec(shape, lambda i: (0, 0))      # weights/bias
    batched = lambda shape: pl.BlockSpec(shape, lambda i: (i, 0))  # batch-tiled

    flops = 2 * B_pad * h_pad * (S + C + h_pad + head_pad)
    bytes_accessed = (B_pad * (S + C) * 4 + B_pad * head_pad * 4
                      + (S + C) * h_pad * 4 + h_pad * h_pad * 2
                      + h_pad * head_pad * 2 + (2 * h_pad + head_pad) * 4)

    heads = pl.pallas_call(
        functools.partial(_gaussian_policy_kernel, num_actions=num_actions),
        out_shape=jax.ShapeDtypeStruct((B_pad, head_pad), jnp.float32),
        grid=(B_pad // TB,),
        in_specs=[
            batched((TB, S)), batched((TB, C)),
            rep(p["w1s"].shape), rep(p["w1c"].shape), rep(p["b1"].shape),
            rep(p["w2"].shape), rep(p["b2"].shape),
            rep(p["wh"].shape), rep(p["bh"].shape),
        ],
        out_specs=batched((TB, head_pad)),
        compiler_params=pltpu.CompilerParams(
            dimension_semantics=("parallel",)),
        cost_estimate=pl.CostEstimate(flops=flops, transcendentals=0,
                                      bytes_accessed=bytes_accessed),
    )(state, context, p["w1s"], p["w1c"], p["b1"],
      p["w2"], p["b2"], p["wh"], p["bh"])

    mean = heads[:B, :num_actions]
    log_std = heads[:B, num_actions:2 * num_actions]
    return mean, log_std


def _reference_forward(state, context, params):
    """Pure-JAX reference with the same fp32-layer1 / bf16-layer2+heads math."""
    bf = jnp.bfloat16
    xu = jnp.concatenate([state, context], axis=1)
    h1 = jnp.maximum(jnp.dot(xu, params["w1"],
                             preferred_element_type=jnp.float32)
                     + params["b1"], 0.0)
    h2 = jnp.maximum(jnp.dot(h1.astype(bf), params["w2"].astype(bf),
                             preferred_element_type=jnp.float32)
                     + params["b2"], 0.0)
    mean = jnp.dot(h2.astype(bf), params["wm"].astype(bf),
                   preferred_element_type=jnp.float32) + params["bm"]
    log_std = jnp.dot(h2.astype(bf), params["ws"].astype(bf),
                      preferred_element_type=jnp.float32) + params["bs"]
    return mean, jnp.clip(log_std, LOG_SIG_MIN, LOG_SIG_MAX)


if __name__ == "__main__":
    # Small shapes consistent with the module: state dim 12 + context (skill)
    # dim 4 -> num_inputs=16, hidden_dim=32, num_actions=6, batch=8.
    B, STATE_DIM, CONTEXT_DIM, HIDDEN, NUM_ACTIONS = 8, 12, 4, 32, 6
    NUM_INPUTS = STATE_DIM + CONTEXT_DIM

    key = jax.random.PRNGKey(0)
    k_state, k_ctx, k_params = jax.random.split(key, 3)

    state = jax.random.normal(k_state, (B, STATE_DIM), jnp.float32)
    context = jax.random.normal(k_ctx, (B, CONTEXT_DIM), jnp.float32)

    params = init_gaussian_policy_params(k_params, NUM_INPUTS, NUM_ACTIONS,
                                         HIDDEN)
    packed = pack_params(params, STATE_DIM)

    mean, log_std = gaussian_policy_forward(state, context, packed,
                                            NUM_ACTIONS)
    mean, log_std = jax.block_until_ready((mean, log_std))

    ref_mean, ref_log_std = _reference_forward(state, context, params)

    assert mean.shape == (B, NUM_ACTIONS)
    assert log_std.shape == (B, NUM_ACTIONS)
    assert jnp.allclose(mean, ref_mean, atol=2e-3, rtol=2e-3)
    assert jnp.allclose(log_std, ref_log_std, atol=2e-3, rtol=2e-3)
    assert bool(jnp.all(log_std <= LOG_SIG_MAX))
    assert bool(jnp.all(log_std >= LOG_SIG_MIN))

    print("KERNEL_OK")
</pallas_src>

<mosaic_0001>
module attributes {stable_mosaic.version = 11 : i64} {
  func.func @_gaussian_policy_kernel(%arg0: i32, %arg1: memref<16x12xf32, #tpu.memory_space<vmem>>, %arg2: memref<16x4xf32, #tpu.memory_space<vmem>>, %arg3: memref<12x128xf32, #tpu.memory_space<vmem>>, %arg4: memref<4x128xf32, #tpu.memory_space<vmem>>, %arg5: memref<1x128xf32, #tpu.memory_space<vmem>>, %arg6: memref<128x128xbf16, #tpu.memory_space<vmem>>, %arg7: memref<1x128xf32, #tpu.memory_space<vmem>>, %arg8: memref<128x128xbf16, #tpu.memory_space<vmem>>, %arg9: memref<1x128xf32, #tpu.memory_space<vmem>>, %arg10: memref<16x128xf32, #tpu.memory_space<vmem>>) attributes {dimension_semantics = [#tpu.dimension_semantics<parallel>], iteration_bounds = array<i64: 1>, scalar_prefetch = 0 : i64, scratch_operands = 0 : i64, tpu.core_type = #tpu.core_type<tc>, window_params = [{transform_indices = @transform_0, window_bounds = array<i64: 16, 12>}, {transform_indices = @transform_1, window_bounds = array<i64: 16, 4>}, {pipeline_mode = #tpu.pipeline_mode<synchronous>, transform_indices = @transform_2, window_bounds = array<i64: 12, 128>}, {pipeline_mode = #tpu.pipeline_mode<synchronous>, transform_indices = @transform_3, window_bounds = array<i64: 4, 128>}, {pipeline_mode = #tpu.pipeline_mode<synchronous>, transform_indices = @transform_4, window_bounds = array<i64: 1, 128>}, {pipeline_mode = #tpu.pipeline_mode<synchronous>, transform_indices = @transform_5, window_bounds = array<i64: 128, 128>}, {pipeline_mode = #tpu.pipeline_mode<synchronous>, transform_indices = @transform_6, window_bounds = array<i64: 1, 128>}, {pipeline_mode = #tpu.pipeline_mode<synchronous>, transform_indices = @transform_7, window_bounds = array<i64: 128, 128>}, {pipeline_mode = #tpu.pipeline_mode<synchronous>, transform_indices = @transform_8, window_bounds = array<i64: 1, 128>}, {transform_indices = @transform_9, window_bounds = array<i64: 16, 128>}]} {
    %c0 = arith.constant 0 : index
    %c0_0 = arith.constant 0 : index
    %0 = vector.load %arg1[%c0, %c0_0] : memref<16x12xf32, #tpu.memory_space<vmem>>, vector<16x12xf32>
    %c0_1 = arith.constant 0 : index
    %c0_2 = arith.constant 0 : index
    %1 = vector.load %arg3[%c0_1, %c0_2] : memref<12x128xf32, #tpu.memory_space<vmem>>, vector<12x128xf32>
    %cst = arith.constant dense<0.000000e+00> : vector<16x128xf32>
    %2 = tpu.matmul %0, %1, %cst {dimension_numbers = #tpu.dot_dimension_numbers<[1], [0], [0], [1], [0, 0, 1, 1], [], []>} : vector<16x12xf32>, vector<12x128xf32>, vector<16x128xf32> -> vector<16x128xf32>
    %c0_3 = arith.constant 0 : index
    %c0_4 = arith.constant 0 : index
    %3 = vector.load %arg2[%c0_3, %c0_4] : memref<16x4xf32, #tpu.memory_space<vmem>>, vector<16x4xf32>
    %c0_5 = arith.constant 0 : index
    %c0_6 = arith.constant 0 : index
    %4 = vector.load %arg4[%c0_5, %c0_6] : memref<4x128xf32, #tpu.memory_space<vmem>>, vector<4x128xf32>
    %cst_7 = arith.constant dense<0.000000e+00> : vector<16x128xf32>
    %5 = tpu.matmul %3, %4, %cst_7 {dimension_numbers = #tpu.dot_dimension_numbers<[1], [0], [0], [1], [0, 0, 1, 1], [], []>} : vector<16x4xf32>, vector<4x128xf32>, vector<16x128xf32> -> vector<16x128xf32>
    %6 = arith.addf %2, %5 : vector<16x128xf32>
    %c0_8 = arith.constant 0 : index
    %c0_9 = arith.constant 0 : index
    %7 = vector.load %arg5[%c0_8, %c0_9] : memref<1x128xf32, #tpu.memory_space<vmem>>, vector<1x128xf32>
    %8 = vector.broadcast %7 : vector<1x128xf32> to vector<16x128xf32>
    %9 = arith.addf %6, %8 : vector<16x128xf32>
    %cst_10 = arith.constant 0.000000e+00 : f32
    %10 = vector.broadcast %cst_10 : f32 to vector<16x128xf32>
    %11 = arith.maximumf %9, %10 : vector<16x128xf32>
    %12 = arith.truncf %11 : vector<16x128xf32> to vector<16x128xbf16>
    %c0_11 = arith.constant 0 : index
    %c0_12 = arith.constant 0 : index
    %13 = vector.load %arg6[%c0_11, %c0_12] : memref<128x128xbf16, #tpu.memory_space<vmem>>, vector<128x128xbf16>
    %cst_13 = arith.constant dense<0.000000e+00> : vector<16x128xf32>
    %14 = tpu.matmul %12, %13, %cst_13 {dimension_numbers = #tpu.dot_dimension_numbers<[1], [0], [0], [1], [0, 0, 1, 1], [], []>} : vector<16x128xbf16>, vector<128x128xbf16>, vector<16x128xf32> -> vector<16x128xf32>
    %c0_14 = arith.constant 0 : index
    %c0_15 = arith.constant 0 : index
    %15 = vector.load %arg7[%c0_14, %c0_15] : memref<1x128xf32, #tpu.memory_space<vmem>>, vector<1x128xf32>
    %16 = vector.broadcast %15 : vector<1x128xf32> to vector<16x128xf32>
    %17 = arith.addf %14, %16 : vector<16x128xf32>
    %cst_16 = arith.constant 0.000000e+00 : f32
    %18 = vector.broadcast %cst_16 : f32 to vector<16x128xf32>
    %19 = arith.maximumf %17, %18 : vector<16x128xf32>
    %20 = arith.truncf %19 : vector<16x128xf32> to vector<16x128xbf16>
    %c0_17 = arith.constant 0 : index
    %c0_18 = arith.constant 0 : index
    %21 = vector.load %arg8[%c0_17, %c0_18] : memref<128x128xbf16, #tpu.memory_space<vmem>>, vector<128x128xbf16>
    %cst_19 = arith.constant dense<0.000000e+00> : vector<16x128xf32>
    %22 = tpu.matmul %20, %21, %cst_19 {dimension_numbers = #tpu.dot_dimension_numbers<[1], [0], [0], [1], [0, 0, 1, 1], [], []>} : vector<16x128xbf16>, vector<128x128xbf16>, vector<16x128xf32> -> vector<16x128xf32>
    %c0_20 = arith.constant 0 : index
    %c0_21 = arith.constant 0 : index
    %23 = vector.load %arg9[%c0_20, %c0_21] : memref<1x128xf32, #tpu.memory_space<vmem>>, vector<1x128xf32>
    %24 = vector.broadcast %23 : vector<1x128xf32> to vector<16x128xf32>
    %25 = arith.addf %22, %24 : vector<16x128xf32>
    %26 = tpu.iota {dimensions = array<i32: 1>} : vector<16x128xi32>
    %cst_22 = arith.constant -2.000000e+01 : f32
    %cst_23 = arith.constant 2.000000e+00 : f32
    %27 = vector.broadcast %cst_22 : f32 to vector<16x128xf32>
    %28 = arith.maximumf %27, %25 : vector<16x128xf32>
    %29 = vector.broadcast %cst_23 : f32 to vector<16x128xf32>
    %30 = arith.minimumf %29, %28 : vector<16x128xf32>
    %c6_i32 = arith.constant 6 : i32
    %31 = vector.broadcast %c6_i32 : i32 to vector<16x128xi32>
    %32 = arith.cmpi sge, %26, %31 : vector<16x128xi32>
    %33 = arith.select %32, %30, %25 : vector<16x128xi1>, vector<16x128xf32>
    %c0_24 = arith.constant 0 : index
    %c0_25 = arith.constant 0 : index
    %34 = vector.load %arg10[%c0_24, %c0_25] : memref<16x128xf32, #tpu.memory_space<vmem>>, vector<16x128xf32>
    tpu.vector_store %arg10[%c0_24, %c0_25], %33 {strides = array<i32>} : memref<16x128xf32, #tpu.memory_space<vmem>>, vector<16x128xf32>,
    return
  }
  func.func @transform_0(%arg0: i32) -> (i32, i32) {
    %c0_i32 = arith.constant 0 : i32
    %c0_i32_0 = arith.constant 0 : i32
    return %arg0, %c0_i32 : i32, i32
  }
  func.func @transform_1(%arg0: i32) -> (i32, i32) {
    %c0_i32 = arith.constant 0 : i32
    %c0_i32_0 = arith.constant 0 : i32
    return %arg0, %c0_i32 : i32, i32
  }
  func.func @transform_2(%arg0: i32) -> (i32, i32) {
    %c0_i32 = arith.constant 0 : i32
    %c0_i32_0 = arith.constant 0 : i32
    %c0_i32_1 = arith.constant 0 : i32
    return %c0_i32, %c0_i32_0 : i32, i32
  }
  func.func @transform_3(%arg0: i32) -> (i32, i32) {
    %c0_i32 = arith.constant 0 : i32
    %c0_i32_0 = arith.constant 0 : i32
    %c0_i32_1 = arith.constant 0 : i32
    return %c0_i32, %c0_i32_0 : i32, i32
  }
  func.func @transform_4(%arg0: i32) -> (i32, i32) {
    %c0_i32 = arith.constant 0 : i32
    %c0_i32_0 = arith.constant 0 : i32
    %c0_i32_1 = arith.constant 0 : i32
    return %c0_i32, %c0_i32_0 : i32, i32
  }
  func.func @transform_5(%arg0: i32) -> (i32, i32) {
    %c0_i32 = arith.constant 0 : i32
    %c0_i32_0 = arith.constant 0 : i32
    %c0_i32_1 = arith.constant 0 : i32
    return %c0_i32, %c0_i32_0 : i32, i32
  }
  func.func @transform_6(%arg0: i32) -> (i32, i32) {
    %c0_i32 = arith.constant 0 : i32
    %c0_i32_0 = arith.constant 0 : i32
    %c0_i32_1 = arith.constant 0 : i32
    return %c0_i32, %c0_i32_0 : i32, i32
  }
  func.func @transform_7(%arg0: i32) -> (i32, i32) {
    %c0_i32 = arith.constant 0 : i32
    %c0_i32_0 = arith.constant 0 : i32
    %c0_i32_1 = arith.constant 0 : i32
    return %c0_i32, %c0_i32_0 : i32, i32
  }
  func.func @transform_8(%arg0: i32) -> (i32, i32) {
    %c0_i32 = arith.constant 0 : i32
    %c0_i32_0 = arith.constant 0 : i32
    %c0_i32_1 = arith.constant 0 : i32
    return %c0_i32, %c0_i32_0 : i32, i32
  }
  func.func @transform_9(%arg0: i32) -> (i32, i32) {
    %c0_i32 = arith.constant 0 : i32
    %c0_i32_0 = arith.constant 0 : i32
    return %arg0, %c0_i32 : i32, i32
  }
}

</mosaic_0001>

<llo_original>
// kernel: tpu_custom_call.1
$region0: #{tpu_custom_call.1}
  #allocation0 [shape = 'u32[]', space=smem, size = 0x4, offset = 0x4, fixed_abs, tag = 'smem constant byte address 0x4 - core index']
  #allocation1 [shape = 'u32[72,128]{1,0:T(1,128)}', space=vmem, size = 0x9000, scoped, tag = 'internal scratch']
  %s0 = inlined_call_operand.vmem [shape: f32[16,12], index: 0, kind: input, shape index: {}]
  %s1 = inlined_call_operand.vmem [shape: f32[16,4], index: 1, kind: input, shape index: {}]
  %s2 = inlined_call_operand.hbm [shape: f32[12,128], index: 2, kind: input, shape index: {}]
  %s3 = inlined_call_operand.vmem [shape: f32[4,128], index: 3, kind: input, shape index: {}]
  %s4 = inlined_call_operand.vmem [shape: f32[1,128], index: 4, kind: input, shape index: {}]
  %s5 = inlined_call_operand.hbm [shape: bf16[128,128], index: 5, kind: input, shape index: {}]
  %s6 = inlined_call_operand.vmem [shape: f32[1,128], index: 6, kind: input, shape index: {}]
  %s7 = inlined_call_operand.hbm [shape: bf16[128,128], index: 7, kind: input, shape index: {}]
  %s8 = inlined_call_operand.vmem [shape: f32[1,128], index: 8, kind: input, shape index: {}]
  %s9 = inlined_call_operand.hbm [shape: f32[16,128], index: 9, kind: output, shape index: {}]
  %s10 = sld [smem:[#allocation0]]
  $region58: #{tpu_custom_call.1} parent=0
    _
  %s12 = ssub.s32 1, %s10
  %s13 = scalar_select 0, %s12, %s10
  $region1: #{tpu_custom_call.1} parent=0
    #allocation2 [shape = 'u8[8192]{0}', space=vmem, size = 0x2000, scoped, tag = 'input window, operand 2, single buffered']
    #allocation3 [shape = 's32[1]{0}', space=sflag, size = 0x4, scoped, tag = 'scoped memory for tpu_custom_call.1']
    #allocation4 [shape = 's32[1]{0}', space=sflag, size = 0x4, scoped, tag = 'scoped memory for tpu_custom_call.1']
    #allocation5 [shape = 'u8[32768]{0}', space=vmem, size = 0x8000, scoped, tag = 'input window, operand 5, single buffered']
    #allocation6 [shape = 's32[1]{0}', space=sflag, size = 0x4, scoped, tag = 'scoped memory for tpu_custom_call.1']
    #allocation7 [shape = 'u8[32768]{0}', space=vmem, size = 0x8000, scoped, tag = 'input window, operand 7, single buffered']
    #allocation8 [shape = 'u8[8192]{0}', space=vmem, size = 0x2000, scoped, tag = 'output window, operand 0, single buffered']
    %14 = vsyncpa [#allocation3], 0
    %15 = vsyncpa [#allocation6], 0
    %16 = vsyncpa [#allocation4], 0
    // Predicated region
    $region2: #{tpu_custom_call.1} parent=1 // pred_check
      _
    $region3: #{tpu_custom_call.1} parent=1 // pred_check_branch
      %18 = sbr.rel (0) target = $region5
    $region4: #{tpu_custom_call.1} parent=1 // pred_region
      _
    $region5: #{tpu_custom_call.1} parent=1 // pred_fallthru
      _
    // Predicated region
    $region6: #{tpu_custom_call.1} parent=1 // pred_check
      _
    $region7: #{tpu_custom_call.1} parent=1 // pred_check_branch
      %20 = sbr.rel (0) target = $region9
    $region8: #{tpu_custom_call.1} parent=1 // pred_region
      _
    $region9: #{tpu_custom_call.1} parent=1 // pred_fallthru
      _
    // Predicated region
    $region10: #{tpu_custom_call.1} parent=1 // pred_check
      _
    $region11: #{tpu_custom_call.1} parent=1 // pred_check_branch
      %22 = sbr.rel (0) target = $region13
    $region12: #{tpu_custom_call.1} parent=1 // pred_region
      %24 = vsyncadd [#allocation3], 0
      %s25 = sshll.u32 %s2, 4
      %s26 = int_to_ptr.hbm [resolvable:$true] %s25
      %s27 = sshll.u32 [#allocation2], 4
      %s28 = int_to_ptr.vmem [resolvable:$true] %s27
      %33 = dma.hbm_to_vmem [thread:$0]  %s26, 256, %s28, [#allocation3], 128, 128, 8
    $region13: #{tpu_custom_call.1} parent=1 // pred_fallthru
      _
    // Predicated region
    $region14: #{tpu_custom_call.1} parent=1 // pred_check
      _
    $region15: #{tpu_custom_call.1} parent=1 // pred_check_branch
      %35 = sbr.rel (0) target = $region17
    $region16: #{tpu_custom_call.1} parent=1 // pred_region
      _
    $region17: #{tpu_custom_call.1} parent=1 // pred_fallthru
      _
    // Predicated region
    $region18: #{tpu_custom_call.1} parent=1 // pred_check
      _
    $region19: #{tpu_custom_call.1} parent=1 // pred_check_branch
      %37 = sbr.rel (0) target = $region21
    $region20: #{tpu_custom_call.1} parent=1 // pred_region
      _
    $region21: #{tpu_custom_call.1} parent=1 // pred_fallthru
      _
    // Predicated region
    $region22: #{tpu_custom_call.1} parent=1 // pred_check
      _
    $region23: #{tpu_custom_call.1} parent=1 // pred_check_branch
      %39 = sbr.rel (0) target = $region25
    $region24: #{tpu_custom_call.1} parent=1 // pred_region
      %41 = vsyncadd [#allocation6], 0
      %s42 = sshll.u32 %s5, 4
      %s43 = int_to_ptr.hbm [resolvable:$true] %s42
      %s44 = sshll.u32 [#allocation5], 4
      %s45 = int_to_ptr.vmem [resolvable:$true] %s44
      %50 = dma.hbm_to_vmem [thread:$0]  %s43, 1024, %s45, [#allocation6], 64, 64, 4
    $region25: #{tpu_custom_call.1} parent=1 // pred_fallthru
      _
    // Predicated region
    $region26: #{tpu_custom_call.1} parent=1 // pred_check
      _
    $region27: #{tpu_custom_call.1} parent=1 // pred_check_branch
      %52 = sbr.rel (0) target = $region29
    $region28: #{tpu_custom_call.1} parent=1 // pred_region
      _
    $region29: #{tpu_custom_call.1} parent=1 // pred_fallthru
      _
    // Predicated region
    $region30: #{tpu_custom_call.1} parent=1 // pred_check
      _
    $region31: #{tpu_custom_call.1} parent=1 // pred_check_branch
      %54 = sbr.rel (0) target = $region33
    $region32: #{tpu_custom_call.1} parent=1 // pred_region
      %56 = vsyncadd [#allocation6], 0
      %s57 = sshll.u32 %s7, 4
      %s58 = int_to_ptr.hbm [resolvable:$true] %s57
      %s59 = sshll.u32 [#allocation7], 4
      %s60 = int_to_ptr.vmem [resolvable:$true] %s59
      %65 = dma.hbm_to_vmem [thread:$0]  %s58, 1024, %s60, [#allocation6], 64, 64, 4
    $region33: #{tpu_custom_call.1} parent=1 // pred_fallthru
      _
    // Predicated region
    $region34: #{tpu_custom_call.1} parent=1 // pred_check
      _
    $region35: #{tpu_custom_call.1} parent=1 // pred_check_branch
      %67 = sbr.rel (0) target = $region37
    $region36: #{tpu_custom_call.1} parent=1 // pred_region
      _
    $region37: #{tpu_custom_call.1} parent=1 // pred_fallthru
      _
    // Predicated region
    $region38: #{tpu_custom_call.1} parent=1 // pred_check
      _
    $region39: #{tpu_custom_call.1} parent=1 // pred_check_branch
      %69 = sbr.rel (0) target = $region41
    $region40: #{tpu_custom_call.1} parent=1 // pred_region
      %71 = dma.done [#allocation3], 256
    $region41: #{tpu_custom_call.1} parent=1 // pred_fallthru
      _
    // Predicated region
    $region42: #{tpu_custom_call.1} parent=1 // pred_check
      _
    $region43: #{tpu_custom_call.1} parent=1 // pred_check_branch
      %73 = sbr.rel (0) target = $region45
    $region44: #{tpu_custom_call.1} parent=1 // pred_region
      %75 = dma.done [#allocation6], 1024
    $region45: #{tpu_custom_call.1} parent=1 // pred_fallthru
      _
    // Predicated region
    $region46: #{tpu_custom_call.1} parent=1 // pred_check
      _
    $region47: #{tpu_custom_call.1} parent=1 // pred_check_branch
      %77 = sbr.rel (0) target = $region49
    $region48: #{tpu_custom_call.1} parent=1 // pred_region
      %79 = dma.done [#allocation6], 1024
    $region49: #{tpu_custom_call.1} parent=1 // pred_fallthru
      _
    %v80 = vld [vmem:[%s0] sm:$0xff]
    %v81 = vld [vmem:[%s0 + $0x8] sm:$0xff]
    %v82 = vld [vmem:[#allocation2] sm:$0xff]
    %v83 = vld [vmem:[#allocation2 + $0x8] sm:$0xf]
    %v84 = vld [vmem:[%s1] sm:$0xff]
    %v85 = vld [vmem:[%s1 + $0x8] sm:$0xff]
    %v86 = vld [vmem:[%s3] sm:$0xf]
    %vm87 = vcmask 31744
    %v89 = vsel %vm87, %v84, 0
    %v92 = vsel %vm87, %v85, 0
    %vm94 = vcmask 1043456
    %v96 = vsel %vm94, %v86, 0
    %98 = vmatpush.msra.mxu0 0.0
    %99 = vmatpush.msra.mxu0 0.0
    %100 = vmatpush.msra.mxu0 0.0
    %101 = vmatpush.msra.mxu0 0.0
    %102 = vmatpush.msra.mxu0 0.0
    %103 = vmatpush.msra.mxu0 0.0
    %104 = vmatpush.msra.mxu0 0.0
    %105 = vmatpush.msra.mxu0 0.0
    %106 = vmatpush.msra.mxu0 0.0
    %107 = vmatpush.msra.mxu0 0.0
    %108 = vmatpush.msra.mxu0 0.0
    %109 = vmatpush.msra.mxu0 0.0
    %110 = vmatpush.msra.mxu0 0.0
    %111 = vmatpush.msra.mxu0 0.0
    %112 = vmatpush.msra.mxu0 0.0
    %113 = vmatpush.msra.mxu0 %v96
    %114 = vmatmul.f32.gmra.mxu0 %v89
    %v115 = vpop.f32.mrf.mxu0
    %v116 = vadd.f32 0.0, %v115
    %117 = vmatmul.f32.gmra.mxu0 %v92
    %v118 = vpop.f32.mrf.mxu0
    %v119 = vadd.f32 0.0, %v118
    %120 = vdwg.mxu0
    %vm121 = vcmask 97280
    %v123 = vsel %vm121, %v80, 0
    %v126 = vsel %vm121, %v81, 0
    %v129 = vsel %vm94, %v83, 0
    %131 = vmatpush.msra.mxu0 0.0
    %132 = vmatpush.msra.mxu0 0.0
    %133 = vmatpush.msra.mxu0 0.0
    %134 = vmatpush.msra.mxu0 0.0
    %135 = vmatpush.msra.mxu0 0.0
    %136 = vmatpush.msra.mxu0 0.0
    %137 = vmatpush.msra.mxu0 0.0
    %138 = vmatpush.msra.mxu0 0.0
    %139 = vmatpush.msra.mxu0 0.0
    %140 = vmatpush.msra.mxu0 0.0
    %141 = vmatpush.msra.mxu0 0.0
    %142 = vmatpush.msra.mxu0 0.0
    %143 = vmatpush.msra.mxu0 0.0
    %144 = vmatpush.msra.mxu0 0.0
    %145 = vmatpush.msra.mxu0 %v129
    %146 = vmatpush.msra.mxu0 %v82
    %147 = vmatmul.f32.gmra.mxu0 %v123
    %v148 = vpop.f32.mrf.mxu0
    %v149 = vadd.f32 %v116, %v148
    %150 = vmatmul.f32.gmra.mxu0 %v126
    %v151 = vpop.f32.mrf.mxu0
    %v152 = vadd.f32 %v119, %v151
    %153 = vdwg.mxu0
    %v154 = vld [vmem:[%s4] sm:$0x1]
    %v156 = vperm.slane %v154, 0
    %v158 = vadd.f32 %v149, %v156
    %v159 = vadd.f32 %v152, %v156
    %v160 = vmax.f32 %v158, 0.0
    %v161 = vmax.f32 %v159, 0.0
    %v162 = vpack.c.bf16 %v161, %v160
    %v163 = vld [vmem:[#allocation5] sm:$0xf]
    %v164 = vld [vmem:[#allocation5 + $0x4] sm:$0xf]
    %v165 = vld [vmem:[#allocation5 + $0x8] sm:$0xf]
    %v166 = vld [vmem:[#allocation5 + $0xc] sm:$0xf]
    %v167 = vld [vmem:[#allocation5 + $0x10] sm:$0xf]
    %v168 = vld [vmem:[#allocation5 + $0x14] sm:$0xf]
    %v169 = vld [vmem:[#allocation5 + $0x18] sm:$0xf]
    %v170 = vld [vmem:[#allocation5 + $0x1c] sm:$0xf]
    %v171 = vld [vmem:[#allocation5 + $0x20] sm:$0xf]
    %v172 = vld [vmem:[#allocation5 + $0x24] sm:$0xf]
    %v173 = vld [vmem:[#allocation5 + $0x28] sm:$0xf]
    %v174 = vld [vmem:[#allocation5 + $0x2c] sm:$0xf]
    %v175 = vld [vmem:[#allocation5 + $0x30] sm:$0xf]
    %v176 = vld [vmem:[#allocation5 + $0x34] sm:$0xf]
    %v177 = vld [vmem:[#allocation5 + $0x38] sm:$0xf]
    %v178 = vld [vmem:[#allocation5 + $0x3c] sm:$0xf]
    %v179 = vld [vmem:[%s6] sm:$0x1]
    %v181 = vperm.slane %v179, 0
    %v199 = vunpack.c.l.b16 %v163
    %v200 = vunpack.c.l.b16 %v164
    %v201 = vunpack.c.l.b16 %v165
    %v202 = vunpack.c.l.b16 %v166
    %v203 = vunpack.c.l.b16 %v167
    %v204 = vunpack.c.l.b16 %v168
    %v205 = vunpack.c.l.b16 %v169
    %v206 = vunpack.c.l.b16 %v170
    %v207 = vunpack.c.l.b16 %v171
    %v208 = vunpack.c.l.b16 %v172
    %v209 = vunpack.c.l.b16 %v173
    %v210 = vunpack.c.l.b16 %v174
    %v211 = vunpack.c.l.b16 %v175
    %v212 = vunpack.c.l.b16 %v176
    %v213 = vunpack.c.l.b16 %v177
    %v214 = vunpack.c.l.b16 %v178
    %v215 = vpack.c.b16 %v200, %v199
    %v216 = vpack.c.b16 %v202, %v201
    %v217 = vpack.c.b16 %v204, %v203
    %v218 = vpack.c.b16 %v206, %v205
    %v219 = vpack.c.b16 %v208, %v207
    %v220 = vpack.c.b16 %v210, %v209
    %v221 = vpack.c.b16 %v212, %v211
    %v222 = vpack.c.b16 %v214, %v213
    %231 = vmatpush.bf16.msra.mxu0 %v222
    %232 = vmatpush.bf16.msra.mxu0 %v221
    %233 = vmatpush.bf16.msra.mxu0 %v220
    %234 = vmatpush.bf16.msra.mxu0 %v219
    %235 = vmatpush.bf16.msra.mxu0 %v218
    %236 = vmatpush.bf16.msra.mxu0 %v217
    %237 = vmatpush.bf16.msra.mxu0 %v216
    %238 = vmatpush.bf16.msra.mxu0 %v215
    %239 = vmatmul.bf16.gmra.mxu0 %v162
    %v240 = vpop.f32.mrf.mxu0
    %v241 = vadd.f32 %v181, %v240
    %v242 = vpop.f32.mrf.mxu0
    %v243 = vadd.f32 %v181, %v242
    %244 = vdwg.mxu0
    %v245 = vmax.f32 %v241, 0.0
    %v246 = vmax.f32 %v243, 0.0
    %v247 = vpack.c.bf16 %v246, %v245
    %v248 = vld [vmem:[#allocation7] sm:$0xf]
    %v249 = vld [vmem:[#allocation7 + $0x4] sm:$0xf]
    %v250 = vld [vmem:[#allocation7 + $0x8] sm:$0xf]
    %v251 = vld [vmem:[#allocation7 + $0xc] sm:$0xf]
    %v252 = vld [vmem:[#allocation7 + $0x10] sm:$0xf]
    %v253 = vld [vmem:[#allocation7 + $0x14] sm:$0xf]
    %v254 = vld [vmem:[#allocation7 + $0x18] sm:$0xf]
    %v255 = vld [vmem:[#allocation7 + $0x1c] sm:$0xf]
    %v256 = vld [vmem:[#allocation7 + $0x20] sm:$0xf]
    %v257 = vld [vmem:[#allocation7 + $0x24] sm:$0xf]
    %v258 = vld [vmem:[#allocation7 + $0x28] sm:$0xf]
    %v259 = vld [vmem:[#allocation7 + $0x2c] sm:$0xf]
    %v260 = vld [vmem:[#allocation7 + $0x30] sm:$0xf]
    %v261 = vld [vmem:[#allocation7 + $0x34] sm:$0xf]
    %v262 = vld [vmem:[#allocation7 + $0x38] sm:$0xf]
    %v263 = vld [vmem:[#allocation7 + $0x3c] sm:$0xf]
    %v264 = vld [vmem:[%s8] sm:$0x1]
    %v266 = vperm.slane %v264, 0
    %v284 = vunpack.c.l.b16 %v248
    %v285 = vunpack.c.l.b16 %v249
    %v286 = vunpack.c.l.b16 %v250
    %v287 = vunpack.c.l.b16 %v251
    %v288 = vunpack.c.l.b16 %v252
    %v289 = vunpack.c.l.b16 %v253
    %v290 = vunpack.c.l.b16 %v254
    %v291 = vunpack.c.l.b16 %v255
    %v292 = vunpack.c.l.b16 %v256
    %v293 = vunpack.c.l.b16 %v257
    %v294 = vunpack.c.l.b16 %v258
    %v295 = vunpack.c.l.b16 %v259
    %v296 = vunpack.c.l.b16 %v260
    %v297 = vunpack.c.l.b16 %v261
    %v298 = vunpack.c.l.b16 %v262
    %v299 = vunpack.c.l.b16 %v263
    %v300 = vpack.c.b16 %v285, %v284
    %v301 = vpack.c.b16 %v287, %v286
    %v302 = vpack.c.b16 %v289, %v288
    %v303 = vpack.c.b16 %v291, %v290
    %v304 = vpack.c.b16 %v293, %v292
    %v305 = vpack.c.b16 %v295, %v294
    %v306 = vpack.c.b16 %v297, %v296
    %v307 = vpack.c.b16 %v299, %v298
    %316 = vmatpush.bf16.msra.mxu0 %v307
    %317 = vmatpush.bf16.msra.mxu0 %v306
    %318 = vmatpush.bf16.msra.mxu0 %v305
    %319 = vmatpush.bf16.msra.mxu0 %v304
    %320 = vmatpush.bf16.msra.mxu0 %v303
    %321 = vmatpush.bf16.msra.mxu0 %v302
    %322 = vmatpush.bf16.msra.mxu0 %v301
    %323 = vmatpush.bf16.msra.mxu0 %v300
    %324 = vmatmul.bf16.gmra.mxu0 %v247
    %v325 = vpop.f32.mrf.mxu0
    %v326 = vadd.f32 %v266, %v325
    %v327 = vpop.f32.mrf.mxu0
    %v328 = vadd.f32 %v266, %v327
    %329 = vdwg.mxu0
    %v330 = vlaneseq
    %v331 = vand.u32 %v330, 127
    %v332 = vmax.f32 %v326, -20.0
    %v333 = vmax.f32 %v328, -20.0
    %v334 = vmin.f32 %v332, 2.0
    %v335 = vmin.f32 %v333, 2.0
    %vm336 = vcmp.ge.s32.totalorder %v331, 6
    %v337 = vsel %vm336, %v334, %v326
    %v338 = vsel %vm336, %v335, %v328
    %339 = vst [vmem:[#allocation8] sm:$0xff] %v337
    %340 = vst [vmem:[#allocation8 + $0x8] sm:$0xff] %v338
    // Predicated region
    $region50: #{tpu_custom_call.1} parent=1 // pred_check
      _
    $region51: #{tpu_custom_call.1} parent=1 // pred_check_branch
      %342 = sbr.rel (0) target = $region53
    $region52: #{tpu_custom_call.1} parent=1 // pred_region
      %344 = vsyncadd [#allocation4], 0
      %s345 = sshll.u32 [#allocation8], 4
      %s346 = int_to_ptr.vmem [resolvable:$true] %s345
      %s347 = sshll.u32 %s9, 4
      %s348 = int_to_ptr.hbm [resolvable:$true] %s347
      %353 = dma.vmem_to_hbm [thread:$0]  %s346, 256, %s348, [#allocation4], 128, 128, 8
    $region53: #{tpu_custom_call.1} parent=1 // pred_fallthru
      _
    // Predicated region
    $region54: #{tpu_custom_call.1} parent=1 // pred_check
      _
    $region55: #{tpu_custom_call.1} parent=1 // pred_check_branch
      %355 = sbr.rel (0) target = $region57
    $region56: #{tpu_custom_call.1} parent=1 // pred_region
      %357 = dma.done [#allocation4], 256
    $region57: #{tpu_custom_call.1} parent=1 // pred_fallthru
      _
    %358 = vsyncpa [#allocation3], 1
    %359 = vsyncpa [#allocation6], 1
    %360 = vsyncpa [#allocation4], 1

</llo_original>
